<compile_context>
chip_gen: v5e
topology: v5e:2x2
jax: 0.10.0
libtpu: 0.0.40
codegen_flags: <defaults>
</compile_context>

<pallas_src>
import math

import jax
import jax.numpy as jnp
from jax.experimental import pallas as pl
from jax.experimental.pallas import tpu as pltpu


def _round_up(x: int, m: int) -> int:
    return ((x + m - 1) // m) * m


def _ffn_kernel(x_ref, w1_ref, b1_ref, w2_ref, b2_ref, o_ref, acc_ref):
    # x_ref : (tm, Dp)     w1_ref : (Dp, th)    b1_ref : (1, th)
    # w2_ref: (th, Dp)     b2_ref : (1, Dp)     o_ref  : (tm, Dp)
    # acc_ref: (tm, Dp) f32 scratch; persists across the hidden ("arbitrary") axis.
    h_idx = pl.program_id(1)

    @pl.when(h_idx == 0)
    def _init():
        acc_ref[...] = jnp.zeros_like(acc_ref)

    # fc1 on this hidden chunk (MXU, f32 accumulation) + bias + ReLU.
    h = jnp.dot(x_ref[...], w1_ref[...], preferred_element_type=jnp.float32)
    h = jnp.maximum(h + b1_ref[...], 0.0)

    # fc2: accumulate this hidden chunk's contribution to the output rows.
    acc_ref[...] += jnp.dot(h.astype(w2_ref.dtype), w2_ref[...],
                            preferred_element_type=jnp.float32)

    @pl.when(h_idx == pl.num_programs(1) - 1)
    def _finalize():
        o_ref[...] = (acc_ref[...] + b2_ref[...]).astype(o_ref.dtype)


def _single_buffered_spec(block_shape, index_map):
    """BlockSpec for blocks whose index is constant over the inner (h) axis:
    the second pipeline buffer is pure VMEM waste, so request Buffered(1).
    Falls back to the default (double-buffered) spec if unsupported."""
    if hasattr(pl, "Buffered"):
        try:
            return pl.BlockSpec(block_shape, index_map,
                                pipeline_mode=pl.Buffered(1))
        except TypeError:
            pass
    return pl.BlockSpec(block_shape, index_map)


def pad_ffn_params(w1, b1, w2, b2, *, tile_h=512):
    """Zero-pad FFN params ONCE (at init time) to lane-aligned shapes so the
    per-call forward path never re-copies the weights in HBM.  Padding is
    mathematically inert (extra hidden units / output lanes contribute 0)."""
    D, H = w1.shape
    Dp = _round_up(D, 128)
    Hp0 = _round_up(H, 128)
    th = _round_up(min(tile_h, Hp0), 128)
    Hp = _round_up(Hp0, th)
    w1p = jnp.pad(w1, ((0, Dp - D), (0, Hp - H)))
    b1p = jnp.pad(b1, (0, Hp - H))
    w2p = jnp.pad(w2, ((0, Hp - H), (0, Dp - D)))
    b2p = jnp.pad(b2, (0, Dp - D))
    return w1p, b1p, w2p, b2p


def ffn_forward(x, w1, b1, w2, b2, *, tile_m=512, tile_h=512,
                vmem_limit_bytes=None):
    """Fused FFN forward.

    x  : (..., D)          (bf16 is the fast path; f32 also supported)
    w1 : (Dw, H)  with Dw >= D   (possibly pre-padded via pad_ffn_params)
    b1 : (H,)
    w2 : (H, Dw)
    b2 : (Dw,)
    """
    D = x.shape[-1]
    Dw, H = w1.shape
    assert Dw >= D, "w1 first dim must cover x's feature dim"
    assert w2.shape == (H, Dw)
    assert b1.shape == (H,) and b2.shape == (Dw,)

    lead_shape = x.shape[:-1]
    x2d = x.reshape(-1, D)
    M = x2d.shape[0]

    # Lane / sublane alignment (bf16 packs 16 rows per sublane group, f32 8).
    sublane = 16 if x.dtype == jnp.bfloat16 else 8

    Dp = _round_up(Dw, 128)
    Hp0 = _round_up(H, 128)
    th = _round_up(min(tile_h, Hp0), 128)
    Hp = _round_up(Hp0, th)          # H axis MUST be a multiple of th (zero-padded)

    # M: pad only to the sublane multiple; the grid handles a ragged last tile.
    Mp = _round_up(M, sublane)
    tm = _round_up(min(tile_m, Mp), sublane)
    # Keep at least two M tiles when possible so both v7x TensorCores get work.
    while tm > sublane and pl.cdiv(Mp, tm) < 2:
        tm = _round_up(tm // 2, sublane)

    grid = (pl.cdiv(Mp, tm), Hp // th)

    # --- operand padding (weights only if not already pre-padded/aligned) ---
    if (Dp, Hp) != (Dw, H):
        # Prefer pad_ffn_params() once at init to avoid this per-call HBM copy.
        w1p = jnp.pad(w1, ((0, Dp - Dw), (0, Hp - H)))
        b1v = jnp.pad(b1, (0, Hp - H))
        w2p = jnp.pad(w2, ((0, Hp - H), (0, Dp - Dw)))
        b2v = jnp.pad(b2, (0, Dp - Dw))
    else:
        w1p, b1v, w2p, b2v = w1, b1, w2, b2
    b1p = b1v.reshape(1, Hp)
    b2p = b2v.reshape(1, Dp)

    if (Mp, Dp) != (M, D):
        xp = jnp.pad(x2d, ((0, Mp - M), (0, Dp - D)))
    else:
        xp = x2d

    it_x = jnp.dtype(x.dtype).itemsize
    it_w = jnp.dtype(w1.dtype).itemsize

    # --- VMEM budget: derived from the actual tile footprint ---
    if vmem_limit_bytes is None:
        footprint = (
            1 * tm * Dp * it_x        # x        (single-buffered, const over h)
            + 2 * Dp * th * it_w      # W1 chunk (double-buffered)
            + 2 * 8 * th * it_w       # b1 chunk
            + 2 * th * Dp * it_w      # W2 chunk (double-buffered)
            + 1 * 8 * Dp * it_w       # b2       (single-buffered, const)
            + 2 * tm * Dp * it_x      # output   (double-buffered)
            + tm * Dp * 4             # f32 accumulator scratch
        )
        vmem_limit_bytes = int(min(max(footprint * 1.25 + (4 << 20), 32 << 20),
                                   100 << 20))

    # --- cost estimate: weights are re-streamed once per M tile ---
    m_tiles, _ = grid
    cost = pl.CostEstimate(
        flops=4 * (m_tiles * tm) * Dp * Hp,     # 2*M*D*H (fc1) + 2*M*H*D (fc2)
        transcendentals=0,
        bytes_accessed=int(
            xp.size * it_x
            + (w1p.size + w2p.size + b1p.size) * it_w * m_tiles
            + b2p.size * it_w
            + Mp * Dp * it_x),
    )

    out2d = pl.pallas_call(
        _ffn_kernel,
        out_shape=jax.ShapeDtypeStruct((Mp, Dp), x.dtype),
        grid_spec=pltpu.PrefetchScalarGridSpec(
            num_scalar_prefetch=0,
            grid=grid,
            in_specs=[
                _single_buffered_spec((tm, Dp), lambda i, h: (i, 0)),   # x rows
                pl.BlockSpec((Dp, th), lambda i, h: (0, h)),            # W1 chunk
                pl.BlockSpec((1, th), lambda i, h: (0, h)),             # b1 chunk
                pl.BlockSpec((th, Dp), lambda i, h: (h, 0)),            # W2 chunk
                _single_buffered_spec((1, Dp), lambda i, h: (0, 0)),    # b2
            ],
            out_specs=pl.BlockSpec((tm, Dp), lambda i, h: (i, 0)),
            scratch_shapes=[pltpu.VMEM((tm, Dp), jnp.float32)],
        ),
        compiler_params=pltpu.CompilerParams(
            dimension_semantics=("parallel", "arbitrary"),
            vmem_limit_bytes=int(vmem_limit_bytes),
        ),
        cost_estimate=cost,
    )(xp, w1p, b1p, w2p, b2p)

    return out2d[:M, :D].reshape(*lead_shape, D)


def init_ffn_params(key, input_dim, hidden_dim, dtype=jnp.float32):
    """Deterministic init mimicking torch.nn.Linear (uniform +/- 1/sqrt(fan_in)),
    stored pre-transposed as (in, out)."""
    k1, k2, k3, k4 = jax.random.split(key, 4)
    bound1 = 1.0 / math.sqrt(input_dim)
    bound2 = 1.0 / math.sqrt(hidden_dim)
    w1 = jax.random.uniform(k1, (input_dim, hidden_dim), dtype, -bound1, bound1)
    b1 = jax.random.uniform(k2, (hidden_dim,), dtype, -bound1, bound1)
    w2 = jax.random.uniform(k3, (hidden_dim, input_dim), dtype, -bound2, bound2)
    b2 = jax.random.uniform(k4, (input_dim,), dtype, -bound2, bound2)
    return w1, b1, w2, b2


if __name__ == "__main__":
    # Small shapes: batch=2, seq=8, input_dim=32, hidden_dim=64
    batch, seq, input_dim, hidden_dim = 2, 8, 32, 64

    key = jax.random.PRNGKey(0)
    kx, kp = jax.random.split(key)
    x = jax.random.normal(kx, (batch, seq, input_dim), jnp.float32)
    w1, b1, w2, b2 = init_ffn_params(kp, input_dim, hidden_dim)

    # Pure-JAX reference.
    ref = jnp.maximum(x @ w1 + b1, 0.0) @ w2 + b2

    # f32 path (unpadded weights -> per-call padding branch exercised).
    out = jax.block_until_ready(ffn_forward(x, w1, b1, w2, b2))
    assert out.shape == x.shape
    assert jnp.allclose(out, ref, atol=1e-5, rtol=1e-5)

    # bf16 fast path (weights pre-padded once; f32 accumulation in-kernel).
    w1b, b1b, w2b, b2b = pad_ffn_params(
        *(p.astype(jnp.bfloat16) for p in (w1, b1, w2, b2)))
    out_bf16 = jax.block_until_ready(
        ffn_forward(x.astype(jnp.bfloat16), w1b, b1b, w2b, b2b))
    assert out_bf16.shape == x.shape
    assert jnp.allclose(out_bf16.astype(jnp.float32), ref, atol=5e-2, rtol=5e-2)

    print("KERNEL_OK")
</pallas_src>

<mosaic_0001>
module attributes {stable_mosaic.version = 11 : i64} {
  func.func @_ffn_kernel(%arg0: i32, %arg1: i32, %arg2: memref<8x128xf32, #tpu.memory_space<vmem>>, %arg3: memref<128x128xf32, #tpu.memory_space<vmem>>, %arg4: memref<1x128xf32, #tpu.memory_space<vmem>>, %arg5: memref<128x128xf32, #tpu.memory_space<vmem>>, %arg6: memref<1x128xf32, #tpu.memory_space<vmem>>, %arg7: memref<8x128xf32, #tpu.memory_space<vmem>>, %arg8: memref<8x128xf32, #tpu.memory_space<vmem>>) attributes {dimension_semantics = [#tpu.dimension_semantics<parallel>, #tpu.dimension_semantics<arbitrary>], iteration_bounds = array<i64: 2, 1>, scalar_prefetch = 0 : i64, scratch_operands = 1 : i64, tpu.core_type = #tpu.core_type<tc>, window_params = [{pipeline_mode = #tpu.pipeline_mode<synchronous>, transform_indices = @transform_0, window_bounds = array<i64: 8, 128>}, {transform_indices = @transform_1, window_bounds = array<i64: 128, 128>}, {transform_indices = @transform_2, window_bounds = array<i64: 1, 128>}, {transform_indices = @transform_3, window_bounds = array<i64: 128, 128>}, {pipeline_mode = #tpu.pipeline_mode<synchronous>, transform_indices = @transform_4, window_bounds = array<i64: 1, 128>}, {transform_indices = @transform_5, window_bounds = array<i64: 8, 128>}]} {
    %c0_i32 = arith.constant 0 : i32
    %0 = arith.cmpi eq, %arg1, %c0_i32 : i32
    %1 = arith.extui %0 : i1 to i32
    %c0_i32_0 = arith.constant 0 : i32
    %2 = arith.cmpi ne, %1, %c0_i32_0 : i32
    scf.if %2 {
      %cst_16 = arith.constant 0.000000e+00 : f32
      %19 = vector.broadcast %cst_16 : f32 to vector<8x128xf32>
      %c0_17 = arith.constant 0 : index
      %c0_18 = arith.constant 0 : index
      %20 = vector.load %arg8[%c0_17, %c0_18] : memref<8x128xf32, #tpu.memory_space<vmem>>, vector<8x128xf32>
      tpu.vector_store %arg8[%c0_17, %c0_18], %19 {strides = array<i32>} : memref<8x128xf32, #tpu.memory_space<vmem>>, vector<8x128xf32>,
    } else {
    }
    %c0 = arith.constant 0 : index
    %c0_1 = arith.constant 0 : index
    %3 = vector.load %arg2[%c0, %c0_1] : memref<8x128xf32, #tpu.memory_space<vmem>>, vector<8x128xf32>
    %c0_2 = arith.constant 0 : index
    %c0_3 = arith.constant 0 : index
    %4 = vector.load %arg3[%c0_2, %c0_3] : memref<128x128xf32, #tpu.memory_space<vmem>>, vector<128x128xf32>
    %cst = arith.constant dense<0.000000e+00> : vector<8x128xf32>
    %5 = tpu.matmul %3, %4, %cst {dimension_numbers = #tpu.dot_dimension_numbers<[1], [0], [0], [1], [0, 0, 1, 1], [], []>} : vector<8x128xf32>, vector<128x128xf32>, vector<8x128xf32> -> vector<8x128xf32>
    %c0_4 = arith.constant 0 : index
    %c0_5 = arith.constant 0 : index
    %6 = vector.load %arg4[%c0_4, %c0_5] : memref<1x128xf32, #tpu.memory_space<vmem>>, vector<1x128xf32>
    %7 = vector.broadcast %6 : vector<1x128xf32> to vector<8x128xf32>
    %8 = arith.addf %5, %7 : vector<8x128xf32>
    %cst_6 = arith.constant 0.000000e+00 : f32
    %9 = vector.broadcast %cst_6 : f32 to vector<8x128xf32>
    %10 = arith.maximumf %8, %9 : vector<8x128xf32>
    %c0_7 = arith.constant 0 : index
    %c0_8 = arith.constant 0 : index
    %11 = vector.load %arg8[%c0_7, %c0_8] : memref<8x128xf32, #tpu.memory_space<vmem>>, vector<8x128xf32>
    %c0_9 = arith.constant 0 : index
    %c0_10 = arith.constant 0 : index
    %12 = vector.load %arg5[%c0_9, %c0_10] : memref<128x128xf32, #tpu.memory_space<vmem>>, vector<128x128xf32>
    %cst_11 = arith.constant dense<0.000000e+00> : vector<8x128xf32>
    %13 = tpu.matmul %10, %12, %cst_11 {dimension_numbers = #tpu.dot_dimension_numbers<[1], [0], [0], [1], [0, 0, 1, 1], [], []>} : vector<8x128xf32>, vector<128x128xf32>, vector<8x128xf32> -> vector<8x128xf32>
    %14 = arith.addf %11, %13 : vector<8x128xf32>
    %c0_12 = arith.constant 0 : index
    %c0_13 = arith.constant 0 : index
    %15 = vector.load %arg8[%c0_12, %c0_13] : memref<8x128xf32, #tpu.memory_space<vmem>>, vector<8x128xf32>
    tpu.vector_store %arg8[%c0_12, %c0_13], %14 {strides = array<i32>} : memref<8x128xf32, #tpu.memory_space<vmem>>, vector<8x128xf32>,
    %c0_i32_14 = arith.constant 0 : i32
    %16 = arith.cmpi eq, %arg1, %c0_i32_14 : i32
    %17 = arith.extui %16 : i1 to i32
    %c0_i32_15 = arith.constant 0 : i32
    %18 = arith.cmpi ne, %17, %c0_i32_15 : i32
    scf.if %18 {
      %c0_16 = arith.constant 0 : index
      %c0_17 = arith.constant 0 : index
      %19 = vector.load %arg8[%c0_16, %c0_17] : memref<8x128xf32, #tpu.memory_space<vmem>>, vector<8x128xf32>
      %c0_18 = arith.constant 0 : index
      %c0_19 = arith.constant 0 : index
      %20 = vector.load %arg6[%c0_18, %c0_19] : memref<1x128xf32, #tpu.memory_space<vmem>>, vector<1x128xf32>
      %21 = vector.broadcast %20 : vector<1x128xf32> to vector<8x128xf32>
      %22 = arith.addf %19, %21 : vector<8x128xf32>
      %c0_20 = arith.constant 0 : index
      %c0_21 = arith.constant 0 : index
      %23 = vector.load %arg7[%c0_20, %c0_21] : memref<8x128xf32, #tpu.memory_space<vmem>>, vector<8x128xf32>
      tpu.vector_store %arg7[%c0_20, %c0_21], %22 {strides = array<i32>} : memref<8x128xf32, #tpu.memory_space<vmem>>, vector<8x128xf32>,
    } else {
    }
    return
  }
  func.func @transform_0(%arg0: i32, %arg1: i32) -> (i32, i32) {
    %c0_i32 = arith.constant 0 : i32
    %c0_i32_0 = arith.constant 0 : i32
    return %arg0, %c0_i32 : i32, i32
  }
  func.func @transform_1(%arg0: i32, %arg1: i32) -> (i32, i32) {
    %c0_i32 = arith.constant 0 : i32
    %c0_i32_0 = arith.constant 0 : i32
    return %c0_i32, %arg1 : i32, i32
  }
  func.func @transform_2(%arg0: i32, %arg1: i32) -> (i32, i32) {
    %c0_i32 = arith.constant 0 : i32
    %c0_i32_0 = arith.constant 0 : i32
    return %c0_i32, %arg1 : i32, i32
  }
  func.func @transform_3(%arg0: i32, %arg1: i32) -> (i32, i32) {
    %c0_i32 = arith.constant 0 : i32
    %c0_i32_0 = arith.constant 0 : i32
    return %arg1, %c0_i32 : i32, i32
  }
  func.func @transform_4(%arg0: i32, %arg1: i32) -> (i32, i32) {
    %c0_i32 = arith.constant 0 : i32
    %c0_i32_0 = arith.constant 0 : i32
    %c0_i32_1 = arith.constant 0 : i32
    return %c0_i32, %c0_i32_0 : i32, i32
  }
  func.func @transform_5(%arg0: i32, %arg1: i32) -> (i32, i32) {
    %c0_i32 = arith.constant 0 : i32
    %c0_i32_0 = arith.constant 0 : i32
    return %arg0, %c0_i32 : i32, i32
  }
}

</mosaic_0001>

<llo_original>
// kernel: tpu_custom_call.1
$region0: #{tpu_custom_call.1}
  #allocation0 [shape = 'u32[]', space=smem, size = 0x4, offset = 0x4, fixed_abs, tag = 'smem constant byte address 0x4 - core index']
  #allocation1 [shape = 'u32[72,128]{1,0:T(1,128)}', space=vmem, size = 0x9000, scoped, tag = 'internal scratch']
  #allocation2 [shape = 'f32[8,128]{1,0:T(8,128)}', space=vmem, size = 0x1000, scoped, tag = 'scratch operand']
  %s0 = inlined_call_operand.hbm [shape: f32[16,128], index: 0, kind: input, shape index: {}]
  %s1 = inlined_call_operand.hbm [shape: f32[128,128], index: 1, kind: input, shape index: {}]
  %s2 = inlined_call_operand.vmem [shape: f32[1,128], index: 2, kind: input, shape index: {}]
  %s3 = inlined_call_operand.hbm [shape: f32[128,128], index: 3, kind: input, shape index: {}]
  %s4 = inlined_call_operand.vmem [shape: f32[1,128], index: 4, kind: input, shape index: {}]
  %s5 = inlined_call_operand.hbm [shape: f32[16,128], index: 5, kind: output, shape index: {}]
  %s6 = sld [smem:[#allocation0]]
  $region73: #{tpu_custom_call.1} parent=0
    _
  %s8 = ssub.s32 1, %s6
  %s9 = scalar_select 0, %s8, %s6
  $region1: #{tpu_custom_call.1} parent=0
    #allocation3 [shape = 'u8[4096]{0}', space=vmem, size = 0x1000, scoped, tag = 'input window, operand 0, single buffered']
    #allocation4 [shape = 's32[2]{0}', space=sflag, size = 0x8, scoped, tag = 'scoped memory for tpu_custom_call.1']
    #allocation5 [shape = 's32[2]{0}', space=sflag, size = 0x8, scoped, tag = 'scoped memory for tpu_custom_call.1']
    #allocation6 [shape = 'u8[65536]{0}', space=vmem, size = 0x10000, scoped, tag = 'input window, operand 1, single buffered']
    #allocation7 [shape = 's32[1]{0}', space=sflag, size = 0x4, scoped, tag = 'scoped memory for tpu_custom_call.1']
    #allocation8 [shape = 'u8[65536]{0}', space=vmem, size = 0x10000, scoped, tag = 'input window, operand 3, single buffered']
    #allocation9 [shape = 'u8[8192]{0}', space=vmem, size = 0x2000, scoped, tag = 'output window, operand 0']
    %10 = vsyncpa [#allocation4], 0
    %11 = vsyncpa [#allocation7], 0
    %12 = vsyncpa [#allocation5], 0
    %s13 = scalar_lea.sflag [#allocation5], 1
    %14 = vsyncpa %s13, 0
    loop: start=0, step=1, limit=4
    $region2: #{tpu_custom_call.1} parent=1 // loop_pre_header
      _
    $region3: #{tpu_custom_call.1} parent=1 // loop_header
      %s16 = sphi 0, %s20
      %p17 = scmp.ge.s32.totalorder %s16, 4
      %s23 = sphi 0, %s35
      %s24 = sphi 0, %s31
      %s25 = sphi 0, %s23
      %s26 = sphi 0, %s24
      %s27 = sphi 0, %s25
      %s28 = sphi 0, %s26
      %s38 = sphi 0, %s40
      %s41 = sphi 0, %s38
      %s42 = sphi 0, %s41
      %s58 = sphi 0, %s42
      %s64 = sphi 0, %s66
      %s67 = sphi 0, %s64
      %s68 = sphi 0, %s67
      %s84 = sphi 0, %s68
      %s90 = sphi 0, %s92
      %s93 = sphi 0, %s90
      %s94 = sphi 0, %s93
      %s110 = sphi 0, %s94
      %s116 = sphi 0, %s118
      %s119 = sphi 0, %s116
      %s120 = sphi 0, %s119
      %s136 = sphi 0, %s120
      %s140 = sphi 0, %s140
      %s142 = sphi 0, %s140
      %s143 = sphi 0, %s142
      %s157 = sphi 0, %s143
      %s163 = sphi 0, %s165
      %s166 = sphi 0, %s163
      %s167 = sphi 0, %s166
      %s183 = sphi 0, %s167
    $region4: #{tpu_custom_call.1} parent=1 // loop_header_branch
      %19 = sbr.rel (%p17) target = $region8
    $region5: #{tpu_custom_call.1} parent=1 // loop_body
      %s21 = ssub.s32 %s16, 1
      %s22 = ssub.s32 %s16, 2
      %s29 = sadd.s32 1, %s24
      %p30 = scmp.ge.s32.totalorder %s29, 1
      %s31 = scalar_select %p30, 0, %s29
      %s32 = sadd.s32 1, %s23
      %s33 = scalar_select %p30, %s32, %s23
      %p34 = scmp.ge.s32.totalorder %s33, 2
      %s35 = scalar_select %p34, 0, %s33
      %s36 = ssub.s32 %s23, %s35
      %p37 = scmp.eq.s32.totalorder %s36, 0
      %s39 = sadd.s32 %s38, 1
      %s40 = scalar_select %p37, %s38, %s39
      %p43 = pneg %p37
      %p44 = scmp.eq.s32.totalorder %s16, 1
      %p45 = por %p43, %p44
      %p46 = scmp.ne.s32.totalorder %s38, %s41
      %p47 = scmp.eq.s32.totalorder %s16, 0
      %p48 = por %p46, %p47
      %p49 = scmp.ne.s32.totalorder %s38, %s41
      %p50 = scmp.eq.s32.totalorder %s21, 1
      %p51 = por %p49, %p50
      %p52 = scmp.ne.s32.totalorder %s41, %s42
      %p53 = scmp.eq.s32.totalorder %s21, 0
      %p54 = por %p52, %p53
      %p55 = scmp.ne.s32.totalorder %s41, %s42
      %p56 = scmp.eq.s32.totalorder %s22, 1
      %p57 = por %p55, %p56
      %p59 = scmp.ne.s32.totalorder %s42, %s58
      %p60 = scmp.eq.s32.totalorder %s22, 0
      %p61 = por %p59, %p60
      %s62 = ssub.s32 %s24, %s31
      %p63 = scmp.eq.s32.totalorder %s62, 0
      %s65 = sadd.s32 %s64, 1
      %s66 = scalar_select %p63, %s64, %s65
      %p69 = pneg %p63
      %p70 = scmp.eq.s32.totalorder %s16, 1
      %p71 = por %p69, %p70
      %p72 = scmp.ne.s32.totalorder %s64, %s67
      %p73 = scmp.eq.s32.totalorder %s16, 0
      %p74 = por %p72, %p73
      %p75 = scmp.ne.s32.totalorder %s64, %s67
      %p76 = scmp.eq.s32.totalorder %s21, 1
      %p77 = por %p75, %p76
      %p78 = scmp.ne.s32.totalorder %s67, %s68
      %p79 = scmp.eq.s32.totalorder %s21, 0
      %p80 = por %p78, %p79
      %p81 = scmp.ne.s32.totalorder %s67, %s68
      %p82 = scmp.eq.s32.totalorder %s22, 1
      %p83 = por %p81, %p82
      %p85 = scmp.ne.s32.totalorder %s68, %s84
      %p86 = scmp.eq.s32.totalorder %s22, 0
      %p87 = por %p85, %p86
      %s88 = ssub.s32 %s24, %s31
      %p89 = scmp.eq.s32.totalorder %s88, 0
      %s91 = sadd.s32 %s90, 1
      %s92 = scalar_select %p89, %s90, %s91
      %p95 = pneg %p89
      %p96 = scmp.eq.s32.totalorder %s16, 1
      %p97 = por %p95, %p96
      %p98 = scmp.ne.s32.totalorder %s90, %s93
      %p99 = scmp.eq.s32.totalorder %s16, 0
      %p100 = por %p98, %p99
      %p101 = scmp.ne.s32.totalorder %s90, %s93
      %p102 = scmp.eq.s32.totalorder %s21, 1
      %p103 = por %p101, %p102
      %p104 = scmp.ne.s32.totalorder %s93, %s94
      %p105 = scmp.eq.s32.totalorder %s21, 0
      %p106 = por %p104, %p105
      %p107 = scmp.ne.s32.totalorder %s93, %s94
      %p108 = scmp.eq.s32.totalorder %s22, 1
      %p109 = por %p107, %p108
      %p111 = scmp.ne.s32.totalorder %s94, %s110
      %p112 = scmp.eq.s32.totalorder %s22, 0
      %p113 = por %p111, %p112
      %s114 = ssub.s32 %s24, %s31
      %p115 = scmp.eq.s32.totalorder %s114, 0
      %s117 = sadd.s32 %s116, 1
      %s118 = scalar_select %p115, %s116, %s117
      %p121 = pneg %p115
      %p122 = scmp.eq.s32.totalorder %s16, 1
      %p123 = por %p121, %p122
      %p124 = scmp.ne.s32.totalorder %s116, %s119
      %p125 = scmp.eq.s32.totalorder %s16, 0
      %p126 = por %p124, %p125
      %p127 = scmp.ne.s32.totalorder %s116, %s119
      %p128 = scmp.eq.s32.totalorder %s21, 1
      %p129 = por %p127, %p128
      %p130 = scmp.ne.s32.totalorder %s119, %s120
      %p131 = scmp.eq.s32.totalorder %s21, 0
      %p132 = por %p130, %p131
      %p133 = scmp.ne.s32.totalorder %s119, %s120
      %p134 = scmp.eq.s32.totalorder %s22, 1
      %p135 = por %p133, %p134
      %p137 = scmp.ne.s32.totalorder %s120, %s136
      %p138 = scmp.eq.s32.totalorder %s22, 0
      %p139 = por %p137, %p138
      %s141 = sadd.s32 %s140, 1
      %p144 = scmp.eq.s32.totalorder %s16, 1
      %p145 = scmp.ne.s32.totalorder %s140, %s142
      %p146 = scmp.eq.s32.totalorder %s16, 0
      %p147 = por %p145, %p146
      %p148 = scmp.ne.s32.totalorder %s140, %s142
      %p149 = scmp.eq.s32.totalorder %s21, 1
      %p150 = por %p148, %p149
      %p151 = scmp.ne.s32.totalorder %s142, %s143
      %p152 = scmp.eq.s32.totalorder %s21, 0
      %p153 = por %p151, %p152
      %p154 = scmp.ne.s32.totalorder %s142, %s143
      %p155 = scmp.eq.s32.totalorder %s22, 1
      %p156 = por %p154, %p155
      %p158 = scmp.ne.s32.totalorder %s143, %s157
      %p159 = scmp.eq.s32.totalorder %s22, 0
      %p160 = por %p158, %p159
      %s161 = ssub.s32 %s23, %s35
      %p162 = scmp.eq.s32.totalorder %s161, 0
      %s164 = sadd.s32 %s163, 1
      %s165 = scalar_select %p162, %s163, %s164
      %p168 = pneg %p162
      %p169 = scmp.eq.s32.totalorder %s16, 1
      %p170 = por %p168, %p169
      %p171 = scmp.ne.s32.totalorder %s163, %s166
      %p172 = scmp.eq.s32.totalorder %s16, 0
      %p173 = por %p171, %p172
      %p174 = scmp.ne.s32.totalorder %s163, %s166
      %p175 = scmp.eq.s32.totalorder %s21, 1
      %p176 = por %p174, %p175
      %p177 = scmp.ne.s32.totalorder %s166, %s167
      %p178 = scmp.eq.s32.totalorder %s21, 0
      %p179 = por %p177, %p178
      %p180 = scmp.ne.s32.totalorder %s166, %s167
      %p181 = scmp.eq.s32.totalorder %s22, 1
      %p182 = por %p180, %p181
      %p184 = scmp.ne.s32.totalorder %s167, %s183
      %p185 = scmp.eq.s32.totalorder %s22, 0
      %p186 = por %p184, %p185
      %p187 = scmp.le.s32.totalorder 1, %s16
      %p188 = scmp.lt.s32.totalorder %s16, 3
      %p189 = pnand %p187, %p188
      %p190 = pneg %p189
      // Predicated region
      $region9: #{tpu_custom_call.1} parent=5 // pred_check
        _
      $region10: #{tpu_custom_call.1} parent=5 // pred_check_branch
        %192 = sbr.rel (%p189) target = $region12
      $region11: #{tpu_custom_call.1} parent=5 // pred_region
        %s193 = ssub.s32 %s16, 1
        // Predicated region
        $region13: #{tpu_custom_call.1} parent=11 // pred_check
          %p194 = pneg %p54
        $region14: #{tpu_custom_call.1} parent=11 // pred_check_branch
          %196 = sbr.rel (%p194) target = $region16
        $region15: #{tpu_custom_call.1} parent=11 // pred_region
          %198 = vsyncadd [#allocation4], 0
          %s199 = smul.addr %s25, 8
          %s200 = scalar_lea.hbm %s0, %s199
          %s202 = sshll.u32 %s200, 4
          %s203 = int_to_ptr.hbm [resolvable:$true] %s202
          %s204 = sshll.u32 [#allocation3], 4
          %s205 = int_to_ptr.vmem [resolvable:$true] %s204
          %207 = dma.hbm_to_vmem [thread:$0]  %s203, 128, %s205, [#allocation4]
        $region16: #{tpu_custom_call.1} parent=11 // pred_fallthru
          _
        // Predicated region
        $region17: #{tpu_custom_call.1} parent=11 // pred_check
          %p208 = pneg %p80
        $region18: #{tpu_custom_call.1} parent=11 // pred_check_branch
          %210 = sbr.rel (%p208) target = $region20
        $region19: #{tpu_custom_call.1} parent=11 // pred_region
          %212 = vsyncadd [#allocation7], 0
          %s213 = smul.addr %s26, 8
          %s214 = scalar_lea.hbm %s1, %s213
          %s215 = sshll.u32 %s214, 4
          %s216 = int_to_ptr.hbm [resolvable:$true] %s215
          %s217 = sshll.u32 [#allocation6], 4
          %s218 = int_to_ptr.vmem [resolvable:$true] %s217
          %223 = dma.hbm_to_vmem [thread:$0]  %s216, 2048, %s218, [#allocation7], 128, 128, 8
        $region20: #{tpu_custom_call.1} parent=11 // pred_fallthru
          _
        // Predicated region
        $region21: #{tpu_custom_call.1} parent=11 // pred_check
          %p224 = pneg %p106
        $region22: #{tpu_custom_call.1} parent=11 // pred_check_branch
          %226 = sbr.rel (%p224) target = $region24
        $region23: #{tpu_custom_call.1} parent=11 // pred_region
          %p227 = scmp.lt.s32.totalorder %s26, 0
          %s228 = scalar_select %p227, %s26, 0
          %s229 = scalar_lea.vmem %s2, %s228
        $region24: #{tpu_custom_call.1} parent=11 // pred_fallthru
          _
        // Predicated region
        $region25: #{tpu_custom_call.1} parent=11 // pred_check
          %p230 = pneg %p132
        $region26: #{tpu_custom_call.1} parent=11 // pred_check_branch
          %232 = sbr.rel (%p230) target = $region28
        $region27: #{tpu_custom_call.1} parent=11 // pred_region
          %s233 = smul.u32 16, %s26
          %235 = vsyncadd [#allocation7], 0
          %s236 = smul.addr %s233, 8
          %s237 = scalar_lea.hbm %s3, %s236
          %s238 = sshll.u32 %s237, 4
          %s239 = int_to_ptr.hbm [resolvable:$true] %s238
          %s240 = sshll.u32 [#allocation8], 4
          %s241 = int_to_ptr.vmem [resolvable:$true] %s240
          %246 = dma.hbm_to_vmem [thread:$0]  %s239, 2048, %s241, [#allocation7], 128, 128, 8
        $region28: #{tpu_custom_call.1} parent=11 // pred_fallthru
          _
        // Predicated region
        $region29: #{tpu_custom_call.1} parent=11 // pred_check
          %p247 = pneg %p153
        $region30: #{tpu_custom_call.1} parent=11 // pred_check_branch
          %249 = sbr.rel (%p247) target = $region32
        $region31: #{tpu_custom_call.1} parent=11 // pred_region
          _
        $region32: #{tpu_custom_call.1} parent=11 // pred_fallthru
          _
      $region12: #{tpu_custom_call.1} parent=5 // pred_fallthru
        _
      %p250 = scmp.lt.s32.totalorder %s16, 2
      // Predicated region
      $region33: #{tpu_custom_call.1} parent=5 // pred_check
        %p251 = pneg %p250
      $region34: #{tpu_custom_call.1} parent=5 // pred_check_branch
        %253 = sbr.rel (%p251) target = $region36
      $region35: #{tpu_custom_call.1} parent=5 // pred_region
        _
      $region36: #{tpu_custom_call.1} parent=5 // pred_fallthru
        _
      %p254 = scmp.le.s32.totalorder 1, %s16
      %p255 = scmp.lt.s32.totalorder %s16, 3
      %p256 = pnand %p254, %p255
      %p257 = pneg %p256
      // Predicated region
      $region37: #{tpu_custom_call.1} parent=5 // pred_check
        _
      $region38: #{tpu_custom_call.1} parent=5 // pred_check_branch
        %259 = sbr.rel (%p256) target = $region40
      $region39: #{tpu_custom_call.1} parent=5 // pred_region
        %s260 = ssub.s32 %s16, 1
        // Predicated region
        $region41: #{tpu_custom_call.1} parent=39 // pred_check
          %p261 = pneg %p54
        $region42: #{tpu_custom_call.1} parent=39 // pred_check_branch
          %263 = sbr.rel (%p261) target = $region44
        $region43: #{tpu_custom_call.1} parent=39 // pred_region
          %265 = dma.done [#allocation4], 128
        $region44: #{tpu_custom_call.1} parent=39 // pred_fallthru
          _
        // Predicated region
        $region45: #{tpu_custom_call.1} parent=39 // pred_check
          %p266 = pneg %p80
        $region46: #{tpu_custom_call.1} parent=39 // pred_check_branch
          %268 = sbr.rel (%p266) target = $region48
        $region47: #{tpu_custom_call.1} parent=39 // pred_region
          %270 = dma.done [#allocation7], 2048
        $region48: #{tpu_custom_call.1} parent=39 // pred_fallthru
          _
        // Predicated region
        $region49: #{tpu_custom_call.1} parent=39 // pred_check
          %p271 = pneg %p132
        $region50: #{tpu_custom_call.1} parent=39 // pred_check_branch
          %273 = sbr.rel (%p271) target = $region52
        $region51: #{tpu_custom_call.1} parent=39 // pred_region
          %275 = dma.done [#allocation7], 2048
        $region52: #{tpu_custom_call.1} parent=39 // pred_fallthru
          _
        %p276 = pneg %p54
        %p277 = pneg %p51
        %p278 = pneg %p80
        %p279 = pneg %p77
        %p280 = scmp.lt.s32.totalorder %s26, 0
        %s281 = scalar_select %p280, %s26, 0
        %s282 = scalar_lea.vmem %s2, %s281
        %p283 = pneg %p106
        %p284 = pneg %p103
        %p285 = pneg %p132
        %p286 = pneg %p129
        %p287 = pneg %p153
        %p288 = pneg %p150
        %p289 = pneg %p179
        %p290 = pneg %p176
        %s291 = sand.u32 %s166, 1
        %s292 = scalar_lea.sflag [#allocation5], %s291
        %s293 = sand.u32 %s166, 1
        %s294 = smul.addr %s293, 8
        %s295 = scalar_lea.vmem [#allocation9], %s294
        %p296 = scmp.lt.s32.totalorder %s26, 0
        %s297 = scalar_select %p296, %s26, 0
        %s298 = scalar_lea.vmem %s2, %s297
        %s299 = smul.u32 16, %s26
        %p300 = scmp.eq.s32.totalorder %s26, 0
        // Predicated region
        $region53: #{tpu_custom_call.1} parent=39 // pred_check
          %p301 = pneg %p300
        $region54: #{tpu_custom_call.1} parent=39 // pred_check_branch
          %303 = sbr.rel (%p301) target = $region56
        $region55: #{tpu_custom_call.1} parent=39 // pred_region
          %304 = vst [vmem:[#allocation2] sm:$0xff] 0.0
        $region56: #{tpu_custom_call.1} parent=39 // pred_fallthru
          _
        %v305 = vld [vmem:[#allocation3] sm:$0xff]
        %v306 = vld [vmem:[#allocation6] sm:$0xff]
        %v307 = vld [vmem:[#allocation6 + $0x8] sm:$0xff]
        %v308 = vld [vmem:[#allocation6 + $0x10] sm:$0xff]
        %v309 = vld [vmem:[#allocation6 + $0x18] sm:$0xff]
        %v310 = vld [vmem:[#allocation6 + $0x20] sm:$0xff]
        %v311 = vld [vmem:[#allocation6 + $0x28] sm:$0xff]
        %v312 = vld [vmem:[#allocation6 + $0x30] sm:$0xff]
        %v313 = vld [vmem:[#allocation6 + $0x38] sm:$0xff]
        %v314 = vld [vmem:[#allocation6 + $0x40] sm:$0xff]
        %v315 = vld [vmem:[#allocation6 + $0x48] sm:$0xff]
        %v316 = vld [vmem:[#allocation6 + $0x50] sm:$0xff]
        %v317 = vld [vmem:[#allocation6 + $0x58] sm:$0xff]
        %v318 = vld [vmem:[#allocation6 + $0x60] sm:$0xff]
        %v319 = vld [vmem:[#allocation6 + $0x68] sm:$0xff]
        %v320 = vld [vmem:[#allocation6 + $0x70] sm:$0xff]
        %v321 = vld [vmem:[#allocation6 + $0x78] sm:$0xff]
        %v322 = vld [vmem:[%s298] sm:$0x1]
        %v324 = vperm.slane %v322, 0
        %326 = vmatpush.msra.mxu0 %v321
        %327 = vmatpush.msra.mxu0 %v320
        %328 = vmatpush.msra.mxu0 %v319
        %329 = vmatpush.msra.mxu0 %v318
        %330 = vmatpush.msra.mxu0 %v317
        %331 = vmatpush.msra.mxu0 %v316
        %332 = vmatpush.msra.mxu0 %v315
        %333 = vmatpush.msra.mxu0 %v314
        %334 = vmatpush.msra.mxu0 %v313
        %335 = vmatpush.msra.mxu0 %v312
        %336 = vmatpush.msra.mxu0 %v311
        %337 = vmatpush.msra.mxu0 %v310
        %338 = vmatpush.msra.mxu0 %v309
        %339 = vmatpush.msra.mxu0 %v308
        %340 = vmatpush.msra.mxu0 %v307
        %341 = vmatpush.msra.mxu0 %v306
        %342 = vmatmul.f32.gmra.mxu0 %v305
        %v343 = vpop.f32.mrf.mxu0
        %v344 = vadd.f32 %v324, %v343
        %345 = vdwg.mxu0
        %v346 = vmax.f32 %v344, 0.0
        %v347 = vld [vmem:[#allocation2] sm:$0xff]
        %v348 = vld [vmem:[#allocation8] sm:$0xff]
        %v349 = vld [vmem:[#allocation8 + $0x8] sm:$0xff]
        %v350 = vld [vmem:[#allocation8 + $0x10] sm:$0xff]
        %v351 = vld [vmem:[#allocation8 + $0x18] sm:$0xff]
        %v352 = vld [vmem:[#allocation8 + $0x20] sm:$0xff]
        %v353 = vld [vmem:[#allocation8 + $0x28] sm:$0xff]
        %v354 = vld [vmem:[#allocation8 + $0x30] sm:$0xff]
        %v355 = vld [vmem:[#allocation8 + $0x38] sm:$0xff]
        %v356 = vld [vmem:[#allocation8 + $0x40] sm:$0xff]
        %v357 = vld [vmem:[#allocation8 + $0x48] sm:$0xff]
        %v358 = vld [vmem:[#allocation8 + $0x50] sm:$0xff]
        %v359 = vld [vmem:[#allocation8 + $0x58] sm:$0xff]
        %v360 = vld [vmem:[#allocation8 + $0x60] sm:$0xff]
        %v361 = vld [vmem:[#allocation8 + $0x68] sm:$0xff]
        %v362 = vld [vmem:[#allocation8 + $0x70] sm:$0xff]
        %v363 = vld [vmem:[#allocation8 + $0x78] sm:$0xff]
        %364 = vmatpush.msra.mxu0 %v363
        %365 = vmatpush.msra.mxu0 %v362
        %366 = vmatpush.msra.mxu0 %v361
        %367 = vmatpush.msra.mxu0 %v360
        %368 = vmatpush.msra.mxu0 %v359
        %369 = vmatpush.msra.mxu0 %v358
        %370 = vmatpush.msra.mxu0 %v357
        %371 = vmatpush.msra.mxu0 %v356
        %372 = vmatpush.msra.mxu0 %v355
        %373 = vmatpush.msra.mxu0 %v354
        %374 = vmatpush.msra.mxu0 %v353
        %375 = vmatpush.msra.mxu0 %v352
        %376 = vmatpush.msra.mxu0 %v351
        %377 = vmatpush.msra.mxu0 %v350
        %378 = vmatpush.msra.mxu0 %v349
        %379 = vmatpush.msra.mxu0 %v348
        %380 = vmatmul.f32.gmra.mxu0 %v346
        %v381 = vpop.f32.mrf.mxu0
        %v382 = vadd.f32 0.0, %v381
        %383 = vdwg.mxu0
        %v384 = vadd.f32 %v347, %v382
        %385 = vst [vmem:[#allocation2] sm:$0xff] %v384
        // Predicated region
        $region57: #{tpu_custom_call.1} parent=39 // pred_check
          %p386 = pneg %p300
        $region58: #{tpu_custom_call.1} parent=39 // pred_check_branch
          %388 = sbr.rel (%p386) target = $region60
        $region59: #{tpu_custom_call.1} parent=39 // pred_region
          %v389 = vld [vmem:[#allocation2] sm:$0xff]
          %v390 = vld [vmem:[%s4] sm:$0x1]
          %v392 = vperm.slane %v390, 0
          %v394 = vadd.f32 %v389, %v392
          %395 = vst [vmem:[%s295] sm:$0xff] %v394
        $region60: #{tpu_custom_call.1} parent=39 // pred_fallthru
          _
        %s396 = sand.u32 %s166, 1
        %s397 = scalar_lea.sflag [#allocation5], %s396
        %s398 = sand.u32 %s166, 1
        %s399 = smul.addr %s398, 8
        %s400 = scalar_lea.vmem [#allocation9], %s399
        // Predicated region
        $region61: #{tpu_custom_call.1} parent=39 // pred_check
          %p401 = pneg %p176
        $region62: #{tpu_custom_call.1} parent=39 // pred_check_branch
          %403 = sbr.rel (%p401) target = $region64
        $region63: #{tpu_custom_call.1} parent=39 // pred_region
          %405 = vsyncadd %s397, 0
          %s406 = smul.addr %s25, 8
          %s407 = scalar_lea.hbm %s5, %s406
          %s409 = sshll.u32 %s400, 4
          %s410 = int_to_ptr.vmem [resolvable:$true] %s409
          %s411 = sshll.u32 %s407, 4
          %s412 = int_to_ptr.hbm [resolvable:$true] %s411
          %414 = dma.vmem_to_hbm [thread:$0]  %s410, 128, %s412, %s397
        $region64: #{tpu_custom_call.1} parent=39 // pred_fallthru
          _
      $region40: #{tpu_custom_call.1} parent=5 // pred_fallthru
        _
      %p415 = scmp.le.s32.totalorder 2, %s16
      // Predicated region
      $region65: #{tpu_custom_call.1} parent=5 // pred_check
        %p416 = pneg %p415
      $region66: #{tpu_custom_call.1} parent=5 // pred_check_branch
        %418 = sbr.rel (%p416) target = $region68
      $region67: #{tpu_custom_call.1} parent=5 // pred_region
        %s419 = ssub.s32 %s16, 2
        // Predicated region
        $region69: #{tpu_custom_call.1} parent=67 // pred_check
          %p420 = pneg %p182
        $region70: #{tpu_custom_call.1} parent=67 // pred_check_branch
          %422 = sbr.rel (%p420) target = $region72
        $region71: #{tpu_custom_call.1} parent=67 // pred_region
          %s423 = sand.u32 %s167, 1
          %s424 = scalar_lea.sflag [#allocation5], %s423
          %s425 = sand.u32 %s167, 1
          %s426 = smul.addr %s425, 8
          %s427 = scalar_lea.vmem [#allocation9], %s426
          %429 = dma.done %s424, 128
        $region72: #{tpu_custom_call.1} parent=67 // pred_fallthru
          _
      $region68: #{tpu_custom_call.1} parent=5 // pred_fallthru
        _
    $region6: #{tpu_custom_call.1} parent=1 // loop_footer
      %s20 = sadd.s32 1, %s16
    $region7: #{tpu_custom_call.1} parent=1 // loop_footer_branch
      %15 = sbr.rel target = $region3
    $region8: #{tpu_custom_call.1} parent=1 // loop_exit
      _
    %430 = vsyncpa [#allocation4], 1
    %s431 = scalar_lea.sflag [#allocation4], 1
    %432 = vsyncpa %s431, 1
    %433 = vsyncpa [#allocation7], 1
    %434 = vsyncpa [#allocation5], 1
    %s435 = scalar_lea.sflag [#allocation5], 1
    %436 = vsyncpa %s435, 1

</llo_original>
